<compile_context>
chip_gen: v7x
topology: tpu7x:2x2x1
jax: 0.10.0
libtpu: 0.0.40
codegen_flags: <defaults>
</compile_context>

<pallas_src>
import jax
import jax.numpy as jnp
from jax.experimental import pallas as pl
from jax.experimental.pallas import tpu as pltpu

LANE = 128                      # lane width; classifier output padded to this
_TOKEN_TILE_BUDGET = 16 << 20   # bytes per pipeline buffer for the token tile
                                # (x2 double-buffered). Keeps total VMEM <~44 MiB:
                                # safe on v7x (64 MiB physical), leaves headroom
                                # on v5e/v6e (128 MiB). Tune up on v6e if desired.


def _dialog_meanpool_kernel(tok_ref, inv_ref, w1_ref, b1_ref, w2_ref, b2_ref,
                            out_ref, acc_ref):
    """grid = (B // b_tile, S // s_tile); the S axis is the accumulated reduction."""
    s = pl.program_id(1)

    @pl.when(s == 0)
    def _():
        acc_ref[...] = jnp.zeros_like(acc_ref)

    # Partial sequence-sum of this (b_tile, s_tile, H) tile. dtype=f32 fuses the
    # per-vreg upcast into the reduce (matters when tokens arrive as bf16); no
    # materialized f32 copy of the tile.
    # TODO(synk): could route this reduce through the otherwise-idle MXU as a
    # ones-row contraction; kept as a sublane reduce since the op is HBM-bound.
    acc_ref[...] += jnp.sum(tok_ref[...], axis=1, dtype=jnp.float32)

    @pl.when(s == pl.num_programs(1) - 1)
    def _():
        # mean pooling: unmasked sum * precomputed 1/mask_count (faithful to the
        # PyTorch source, incl. inf on an all-zero mask row). No mask DMA.
        mean_pooled = acc_ref[...] * inv_ref[...]                     # (bt, H) f32
        # dropout -> identity (inference). hidden_layer + ReLU; bf16-in /
        # f32-accumulate matmuls (MXU-native), weights resident in bf16.
        h = jnp.dot(mean_pooled.astype(jnp.bfloat16), w1_ref[...],
                    preferred_element_type=jnp.float32) + b1_ref[...]  # (bt, H)
        h = jnp.maximum(h, 0.0)
        # classifier, padded to LANE output columns -> unmasked lane-dense store
        out_ref[...] = jnp.dot(h.astype(jnp.bfloat16), w2_ref[...],
                               preferred_element_type=jnp.float32) + b2_ref[...]


def _largest_divisor_leq(n, cap):
    for d in range(min(n, cap), 0, -1):
        if n % d == 0:
            return d
    return 1


def dialog_finetune_meanpooling(token_embeddings, attention_mask, w1, b1, w2,
                                b2, *, b_tile=None, s_tile=None):
    B, S, H = token_embeddings.shape
    n_cls = w2.shape[1]
    n_pad = max(LANE, ((n_cls + LANE - 1) // LANE) * LANE)

    # Tokens are streamed in the PRODUCER's dtype: no wrapper-side cast (a
    # separate f32->bf16 XLA pass would read+write the full (B,S,H) tensor in
    # HBM and roughly double traffic on this bandwidth-bound op).
    tok = token_embeddings
    tok_itemsize = jnp.dtype(tok.dtype).itemsize

    # ---- tile selection --------------------------------------------------
    # b_tile: largest divisor of B up to 128 (MXU-friendly epilogue rows, fewer
    # epilogues). With B > 2*b_tile the "parallel" batch axis shards across the
    # 2 TensorCores on v7x.
    if b_tile is None:
        b_tile = _largest_divisor_leq(B, 128)
    # s_tile: as large as possible (<=512) while the double-buffered token tile
    # stays inside the per-buffer budget, so per-step DMA time dominates the
    # ~0.35us grid-step overhead. (Prefer multiples of 16 for bf16 producers.)
    if s_tile is None:
        s_tile = 1
        for d in range(min(S, 512), 0, -1):
            if S % d == 0:
                s_tile = d
                if b_tile * d * H * tok_itemsize <= _TOKEN_TILE_BUDGET:
                    break
    assert B % b_tile == 0 and S % s_tile == 0

    # ---- small precomputed inputs -----------------------------------------
    # per-row 1/count outside the kernel (tiny (B,1) f32) instead of DMAing the
    # whole attention mask just to sum it. Faithful to PyTorch: an all-zero mask
    # row yields inf/nan (no clamp).
    inv_counts = 1.0 / attention_mask.sum(
        axis=1, keepdims=True).astype(jnp.float32)                    # (B, 1)

    # Resident weights in bf16 (half the VMEM of f32; MXU-native inputs).
    # Biases stay f32 (tiny; added to the f32 accumulator). Classifier padded
    # to a lane-dense width so the output store is a full vst.
    w1k = w1.astype(jnp.bfloat16)                                     # (H, H)
    b1k = b1.reshape(1, H).astype(jnp.float32)
    w2p = jnp.zeros((H, n_pad), jnp.bfloat16).at[:, :n_cls].set(
        w2.astype(jnp.bfloat16))
    b2p = jnp.zeros((1, n_pad), jnp.float32).at[:, :n_cls].set(
        b2.reshape(1, n_cls).astype(jnp.float32))

    grid = (B // b_tile, S // s_tile)

    # ---- VMEM budget -------------------------------------------------------
    tok_tile_bytes = b_tile * s_tile * H * tok_itemsize
    wt_bytes = (H * H + H * n_pad) * 2 + (H + n_pad) * 4
    io_bytes = b_tile * (n_pad + 1) * 4
    acc_bytes = b_tile * H * 4
    vmem_limit = (2 * tok_tile_bytes + 2 * wt_bytes + 2 * io_bytes + acc_bytes
                  + (4 << 20))
    vmem_limit = max(int(vmem_limit), 32 << 20)   # never below scoped default

    out_padded = pl.pallas_call(
        _dialog_meanpool_kernel,
        out_shape=jax.ShapeDtypeStruct((B, n_pad), jnp.float32),
        grid_spec=pltpu.PrefetchScalarGridSpec(
            num_scalar_prefetch=0,
            grid=grid,
            in_specs=[
                pl.BlockSpec((b_tile, s_tile, H), lambda i, s: (i, s, 0)),
                pl.BlockSpec((b_tile, 1), lambda i, s: (i, 0)),
                # weights/biases: constant index maps -> fetched once, resident.
                pl.BlockSpec((H, H), lambda i, s: (0, 0)),
                pl.BlockSpec((1, H), lambda i, s: (0, 0)),
                pl.BlockSpec((H, n_pad), lambda i, s: (0, 0)),
                pl.BlockSpec((1, n_pad), lambda i, s: (0, 0)),
            ],
            out_specs=pl.BlockSpec((b_tile, n_pad), lambda i, s: (i, 0)),
            scratch_shapes=[pltpu.VMEM((b_tile, H), jnp.float32)],
        ),
        compiler_params=pltpu.CompilerParams(
            # batch axis parallel (megacore-sharded on multi-TC parts),
            # sequence axis is the VMEM-accumulated reduction -> arbitrary.
            dimension_semantics=("parallel", "arbitrary"),
            vmem_limit_bytes=vmem_limit),
    )(tok, inv_counts, w1k, b1k, w2p, b2p)

    return out_padded[:, :n_cls]


def synthetic_bert(input_ids, attention_mask, embedding_table):
    # TODO(synk): real BERT encoder not implemented; stand-in is a deterministic
    # embedding lookup producing token_embeddings of shape (B, S, H).
    del attention_mask
    return embedding_table[input_ids]


if __name__ == "__main__":
    key = jax.random.PRNGKey(0)
    B, S, H = 2, 16, 32          # batch, seq, bert_hidden_size
    VOCAB, N_CLS = 64, 2

    k_emb, k_w1, k_b1, k_w2, k_b2, k_ids, k_prev = jax.random.split(key, 7)

    embedding_table = jax.random.normal(k_emb, (VOCAB, H), dtype=jnp.float32)

    # Linear(bert_hidden_size, bert_hidden_size)
    w1 = jax.random.normal(k_w1, (H, H), dtype=jnp.float32) * 0.1
    b1 = jax.random.normal(k_b1, (1, H), dtype=jnp.float32) * 0.1
    # Linear(bert_hidden_size, 2)
    w2 = jax.random.normal(k_w2, (H, N_CLS), dtype=jnp.float32) * 0.1
    b2 = jax.random.normal(k_b2, (1, N_CLS), dtype=jnp.float32) * 0.1

    input_ids = jax.random.randint(k_ids, (B, S), 0, VOCAB, dtype=jnp.int32)
    # attention_mask: leading ones, trailing zeros (typical padding pattern)
    lengths = jnp.array([S, S - 5], dtype=jnp.int32)
    attention_mask = (jnp.arange(S)[None, :] < lengths[:, None]).astype(jnp.int32)
    previous_utterance_representations = jax.random.normal(
        k_prev, (B, H), dtype=jnp.float32)  # unused, as in the PyTorch forward

    token_embeddings = synthetic_bert(input_ids, attention_mask, embedding_table)

    # s_tile=8 exercises the S-reduction grid axis (grid = (1, 2)); tokens are
    # f32 here, so 8 sublanes is the native f32 vreg height (no packed relayout).
    logits = dialog_finetune_meanpooling(
        token_embeddings, attention_mask, w1, b1, w2, b2, b_tile=B, s_tile=8)
    logits = jax.block_until_ready(logits)

    # plain-JAX reference mirroring the kernel numerics: exact f32 mean pooling
    # (tokens streamed un-cast), bf16-in / f32-accumulate epilogue matmuls.
    def bf16(x):
        return x.astype(jnp.bfloat16).astype(jnp.float32)

    denom = attention_mask.sum(axis=1, keepdims=True).astype(jnp.float32)
    mean_pooled_ref = token_embeddings.sum(axis=1) / denom
    h_ref = jnp.maximum(bf16(mean_pooled_ref) @ bf16(w1) + b1, 0.0)
    logits_ref = bf16(h_ref) @ bf16(w2) + b2

    assert logits.shape == (B, N_CLS)
    assert jnp.allclose(logits, logits_ref, atol=1e-3, rtol=1e-3), (
        float(jnp.max(jnp.abs(logits - logits_ref))))
    print("KERNEL_OK")
</pallas_src>

<mosaic_0001>
module attributes {stable_mosaic.version = 11 : i64} {
  func.func @_dialog_meanpool_kernel(%arg0: i32, %arg1: i32, %arg2: memref<2x8x32xf32, #tpu.memory_space<vmem>>, %arg3: memref<2x1xf32, #tpu.memory_space<vmem>>, %arg4: memref<32x32xbf16, #tpu.memory_space<vmem>>, %arg5: memref<1x32xf32, #tpu.memory_space<vmem>>, %arg6: memref<32x128xbf16, #tpu.memory_space<vmem>>, %arg7: memref<1x128xf32, #tpu.memory_space<vmem>>, %arg8: memref<2x128xf32, #tpu.memory_space<vmem>>, %arg9: memref<2x32xf32, #tpu.memory_space<vmem>>) attributes {dimension_semantics = [#tpu.dimension_semantics<parallel>, #tpu.dimension_semantics<arbitrary>], iteration_bounds = array<i64: 1, 2>, scalar_prefetch = 0 : i64, scratch_operands = 1 : i64, tpu.core_type = #tpu.core_type<tc>, window_params = [{transform_indices = @transform_0, window_bounds = array<i64: 2, 8, 32>}, {transform_indices = @transform_1, window_bounds = array<i64: 2, 1>}, {pipeline_mode = #tpu.pipeline_mode<synchronous>, transform_indices = @transform_2, window_bounds = array<i64: 32, 32>}, {pipeline_mode = #tpu.pipeline_mode<synchronous>, transform_indices = @transform_3, window_bounds = array<i64: 1, 32>}, {pipeline_mode = #tpu.pipeline_mode<synchronous>, transform_indices = @transform_4, window_bounds = array<i64: 32, 128>}, {pipeline_mode = #tpu.pipeline_mode<synchronous>, transform_indices = @transform_5, window_bounds = array<i64: 1, 128>}, {transform_indices = @transform_6, window_bounds = array<i64: 2, 128>}]} {
    %c0_i32 = arith.constant 0 : i32
    %0 = arith.cmpi eq, %arg1, %c0_i32 : i32
    %1 = arith.extui %0 : i1 to i32
    %c0_i32_0 = arith.constant 0 : i32
    %2 = arith.cmpi ne, %1, %c0_i32_0 : i32
    scf.if %2 {
      %cst_8 = arith.constant 0.000000e+00 : f32
      %11 = vector.broadcast %cst_8 : f32 to vector<2x32xf32>
      %c0_9 = arith.constant 0 : index
      %c0_10 = arith.constant 0 : index
      %12 = vector.load %arg9[%c0_9, %c0_10] : memref<2x32xf32, #tpu.memory_space<vmem>>, vector<2x32xf32>
      tpu.vector_store %arg9[%c0_9, %c0_10], %11 {strides = array<i32>} : memref<2x32xf32, #tpu.memory_space<vmem>>, vector<2x32xf32>,
    } else {
    }
    %c0 = arith.constant 0 : index
    %c0_1 = arith.constant 0 : index
    %3 = vector.load %arg9[%c0, %c0_1] : memref<2x32xf32, #tpu.memory_space<vmem>>, vector<2x32xf32>
    %c0_2 = arith.constant 0 : index
    %c0_3 = arith.constant 0 : index
    %c0_4 = arith.constant 0 : index
    %4 = vector.load %arg2[%c0_2, %c0_3, %c0_4] : memref<2x8x32xf32, #tpu.memory_space<vmem>>, vector<2x8x32xf32>
    %cst = arith.constant dense<0.000000e+00> : vector<2x32xf32>
    %5 = vector.multi_reduction <add>, %4, %cst [1] : vector<2x8x32xf32> to vector<2x32xf32>
    %6 = arith.addf %3, %5 : vector<2x32xf32>
    %c0_5 = arith.constant 0 : index
    %c0_6 = arith.constant 0 : index
    %7 = vector.load %arg9[%c0_5, %c0_6] : memref<2x32xf32, #tpu.memory_space<vmem>>, vector<2x32xf32>
    tpu.vector_store %arg9[%c0_5, %c0_6], %6 {strides = array<i32>} : memref<2x32xf32, #tpu.memory_space<vmem>>, vector<2x32xf32>,
    %c1_i32 = arith.constant 1 : i32
    %8 = arith.cmpi eq, %arg1, %c1_i32 : i32
    %9 = arith.extui %8 : i1 to i32
    %c0_i32_7 = arith.constant 0 : i32
    %10 = arith.cmpi ne, %9, %c0_i32_7 : i32
    scf.if %10 {
      %c0_8 = arith.constant 0 : index
      %c0_9 = arith.constant 0 : index
      %11 = vector.load %arg9[%c0_8, %c0_9] : memref<2x32xf32, #tpu.memory_space<vmem>>, vector<2x32xf32>
      %c0_10 = arith.constant 0 : index
      %c0_11 = arith.constant 0 : index
      %12 = vector.load %arg3[%c0_10, %c0_11] : memref<2x1xf32, #tpu.memory_space<vmem>>, vector<2x1xf32>
      %13 = vector.broadcast %12 : vector<2x1xf32> to vector<2x32xf32>
      %14 = arith.mulf %11, %13 : vector<2x32xf32>
      %15 = arith.truncf %14 : vector<2x32xf32> to vector<2x32xbf16>
      %c0_12 = arith.constant 0 : index
      %c0_13 = arith.constant 0 : index
      %16 = vector.load %arg4[%c0_12, %c0_13] : memref<32x32xbf16, #tpu.memory_space<vmem>>, vector<32x32xbf16>
      %cst_14 = arith.constant dense<0.000000e+00> : vector<2x32xf32>
      %17 = tpu.matmul %15, %16, %cst_14 {dimension_numbers = #tpu.dot_dimension_numbers<[1], [0], [0], [1], [0, 0, 1, 1], [], []>} : vector<2x32xbf16>, vector<32x32xbf16>, vector<2x32xf32> -> vector<2x32xf32>
      %c0_15 = arith.constant 0 : index
      %c0_16 = arith.constant 0 : index
      %18 = vector.load %arg5[%c0_15, %c0_16] : memref<1x32xf32, #tpu.memory_space<vmem>>, vector<1x32xf32>
      %19 = vector.broadcast %18 : vector<1x32xf32> to vector<2x32xf32>
      %20 = arith.addf %17, %19 : vector<2x32xf32>
      %cst_17 = arith.constant 0.000000e+00 : f32
      %21 = vector.broadcast %cst_17 : f32 to vector<2x32xf32>
      %22 = arith.maximumf %20, %21 : vector<2x32xf32>
      %23 = arith.truncf %22 : vector<2x32xf32> to vector<2x32xbf16>
      %c0_18 = arith.constant 0 : index
      %c0_19 = arith.constant 0 : index
      %24 = vector.load %arg6[%c0_18, %c0_19] : memref<32x128xbf16, #tpu.memory_space<vmem>>, vector<32x128xbf16>
      %cst_20 = arith.constant dense<0.000000e+00> : vector<2x128xf32>
      %25 = tpu.matmul %23, %24, %cst_20 {dimension_numbers = #tpu.dot_dimension_numbers<[1], [0], [0], [1], [0, 0, 1, 1], [], []>} : vector<2x32xbf16>, vector<32x128xbf16>, vector<2x128xf32> -> vector<2x128xf32>
      %c0_21 = arith.constant 0 : index
      %c0_22 = arith.constant 0 : index
      %26 = vector.load %arg7[%c0_21, %c0_22] : memref<1x128xf32, #tpu.memory_space<vmem>>, vector<1x128xf32>
      %27 = vector.broadcast %26 : vector<1x128xf32> to vector<2x128xf32>
      %28 = arith.addf %25, %27 : vector<2x128xf32>
      %c0_23 = arith.constant 0 : index
      %c0_24 = arith.constant 0 : index
      %29 = vector.load %arg8[%c0_23, %c0_24] : memref<2x128xf32, #tpu.memory_space<vmem>>, vector<2x128xf32>
      tpu.vector_store %arg8[%c0_23, %c0_24], %28 {strides = array<i32>} : memref<2x128xf32, #tpu.memory_space<vmem>>, vector<2x128xf32>,
    } else {
    }
    return
  }
  func.func @transform_0(%arg0: i32, %arg1: i32) -> (i32, i32, i32) {
    %c0_i32 = arith.constant 0 : i32
    %c0_i32_0 = arith.constant 0 : i32
    return %arg0, %arg1, %c0_i32 : i32, i32, i32
  }
  func.func @transform_1(%arg0: i32, %arg1: i32) -> (i32, i32) {
    %c0_i32 = arith.constant 0 : i32
    %c0_i32_0 = arith.constant 0 : i32
    return %arg0, %c0_i32 : i32, i32
  }
  func.func @transform_2(%arg0: i32, %arg1: i32) -> (i32, i32) {
    %c0_i32 = arith.constant 0 : i32
    %c0_i32_0 = arith.constant 0 : i32
    %c0_i32_1 = arith.constant 0 : i32
    return %c0_i32, %c0_i32_0 : i32, i32
  }
  func.func @transform_3(%arg0: i32, %arg1: i32) -> (i32, i32) {
    %c0_i32 = arith.constant 0 : i32
    %c0_i32_0 = arith.constant 0 : i32
    %c0_i32_1 = arith.constant 0 : i32
    return %c0_i32, %c0_i32_0 : i32, i32
  }
  func.func @transform_4(%arg0: i32, %arg1: i32) -> (i32, i32) {
    %c0_i32 = arith.constant 0 : i32
    %c0_i32_0 = arith.constant 0 : i32
    %c0_i32_1 = arith.constant 0 : i32
    return %c0_i32, %c0_i32_0 : i32, i32
  }
  func.func @transform_5(%arg0: i32, %arg1: i32) -> (i32, i32) {
    %c0_i32 = arith.constant 0 : i32
    %c0_i32_0 = arith.constant 0 : i32
    %c0_i32_1 = arith.constant 0 : i32
    return %c0_i32, %c0_i32_0 : i32, i32
  }
  func.func @transform_6(%arg0: i32, %arg1: i32) -> (i32, i32) {
    %c0_i32 = arith.constant 0 : i32
    %c0_i32_0 = arith.constant 0 : i32
    return %arg0, %c0_i32 : i32, i32
  }
}

</mosaic_0001>

<llo_original>
// kernel: tpu_custom_call.1
$region0: #{tpu_custom_call.1}
  #allocation0 [shape = 'u32[]', space=smem, size = 0x4, offset = 0x4, fixed_abs, tag = 'smem constant byte address 0x4 - core index']
  #allocation1 [shape = 'u32[144,128]{1,0:T(1,128)}', space=vmem, size = 0x12000, scoped, tag = 'internal scratch']
  #allocation2 [shape = 'f32[2,32]{1,0:T(2,128)}', space=vmem, size = 0x400, scoped, tag = 'scratch operand']
  %s0 = inlined_call_operand.hbm [shape: f32[2,16,32], index: 0, kind: input, shape index: {}]
  %s1 = inlined_call_operand.vmem [shape: f32[2,1], index: 1, kind: input, shape index: {}]
  %s2 = inlined_call_operand.hbm [shape: bf16[32,32], index: 2, kind: input, shape index: {}]
  %s3 = inlined_call_operand.vmem [shape: f32[1,32], index: 3, kind: input, shape index: {}]
  %s4 = inlined_call_operand.vmem [shape: bf16[32,128], index: 4, kind: input, shape index: {}]
  %s5 = inlined_call_operand.vmem [shape: f32[1,128], index: 5, kind: input, shape index: {}]
  %s6 = inlined_call_operand.hbm [shape: f32[2,128], index: 6, kind: output, shape index: {}]
  %s7 = sld [smem:[#allocation0]]
  $region73: #{tpu_custom_call.1} parent=0
    _
  %s9 = ssub.s32 1, %s7
  %s10 = scalar_select 0, %s9, %s7
  $region1: #{tpu_custom_call.1} parent=0
    #allocation3 [shape = 'u8[16384]{0}', space=vmem, size = 0x4000, scoped, tag = 'input window, operand 0']
    #allocation4 [shape = 's32[2]{0}', space=sflag, size = 0x8, scoped, tag = 'scoped memory for tpu_custom_call.1']
    #allocation5 [shape = 's32[2]{0}', space=sflag, size = 0x8, scoped, tag = 'scoped memory for tpu_custom_call.1']
    #allocation6 [shape = 'u8[8192]{0}', space=vmem, size = 0x2000, scoped, tag = 'input window, operand 2, single buffered']
    #allocation7 [shape = 's32[1]{0}', space=sflag, size = 0x4, scoped, tag = 'scoped memory for tpu_custom_call.1']
    #allocation8 [shape = 'u8[1024]{0}', space=vmem, size = 0x400, scoped, tag = 'output window, operand 0, single buffered']
    %11 = vsyncpa [#allocation4], 0
    %s12 = scalar_lea.sflag [#allocation4], 1
    %13 = vsyncpa %s12, 0
    %14 = vsyncpa [#allocation7], 0
    %15 = vsyncpa [#allocation5], 0
    loop: start=0, step=1, limit=4
    $region2: #{tpu_custom_call.1} parent=1 // loop_pre_header
      _
    $region3: #{tpu_custom_call.1} parent=1 // loop_header
      %s17 = sphi 0, %s21
      %p18 = scmp.ge.s32.totalorder %s17, 4
      %s24 = sphi 0, %s36
      %s25 = sphi 0, %s32
      %s26 = sphi 0, %s24
      %s27 = sphi 0, %s25
      %s28 = sphi 0, %s26
      %s29 = sphi 0, %s27
      %s41 = sphi 0, %s43
      %s44 = sphi 0, %s41
      %s45 = sphi 0, %s44
      %s61 = sphi 0, %s45
      %s67 = sphi 0, %s69
      %s70 = sphi 0, %s67
      %s71 = sphi 0, %s70
      %s87 = sphi 0, %s71
      %s91 = sphi 0, %s91
      %s93 = sphi 0, %s91
      %s94 = sphi 0, %s93
      %s108 = sphi 0, %s94
      %s112 = sphi 0, %s112
      %s114 = sphi 0, %s112
      %s115 = sphi 0, %s114
      %s129 = sphi 0, %s115
      %s133 = sphi 0, %s133
      %s135 = sphi 0, %s133
      %s136 = sphi 0, %s135
      %s150 = sphi 0, %s136
      %s154 = sphi 0, %s154
      %s156 = sphi 0, %s154
      %s157 = sphi 0, %s156
      %s171 = sphi 0, %s157
      %s177 = sphi 0, %s179
      %s180 = sphi 0, %s177
      %s181 = sphi 0, %s180
      %s197 = sphi 0, %s181
    $region4: #{tpu_custom_call.1} parent=1 // loop_header_branch
      %20 = sbr.rel (%p18) target = $region8
    $region5: #{tpu_custom_call.1} parent=1 // loop_body
      %s22 = ssub.s32 %s17, 1
      %s23 = ssub.s32 %s17, 2
      %s30 = sadd.s32 1, %s25
      %p31 = scmp.ge.s32.totalorder %s30, 2
      %s32 = scalar_select %p31, 0, %s30
      %s33 = sadd.s32 1, %s24
      %s34 = scalar_select %p31, %s33, %s24
      %p35 = scmp.ge.s32.totalorder %s34, 1
      %s36 = scalar_select %p35, 0, %s34
      %s37 = ssub.s32 %s24, %s36
      %s38 = ssub.s32 %s25, %s32
      %s39 = sor.u32 %s37, %s38
      %p40 = scmp.eq.s32.totalorder %s39, 0
      %s42 = sadd.s32 %s41, 1
      %s43 = scalar_select %p40, %s41, %s42
      %p46 = pneg %p40
      %p47 = scmp.eq.s32.totalorder %s17, 1
      %p48 = por %p46, %p47
      %p49 = scmp.ne.s32.totalorder %s41, %s44
      %p50 = scmp.eq.s32.totalorder %s17, 0
      %p51 = por %p49, %p50
      %p52 = scmp.ne.s32.totalorder %s41, %s44
      %p53 = scmp.eq.s32.totalorder %s22, 1
      %p54 = por %p52, %p53
      %p55 = scmp.ne.s32.totalorder %s44, %s45
      %p56 = scmp.eq.s32.totalorder %s22, 0
      %p57 = por %p55, %p56
      %p58 = scmp.ne.s32.totalorder %s44, %s45
      %p59 = scmp.eq.s32.totalorder %s23, 1
      %p60 = por %p58, %p59
      %p62 = scmp.ne.s32.totalorder %s45, %s61
      %p63 = scmp.eq.s32.totalorder %s23, 0
      %p64 = por %p62, %p63
      %s65 = ssub.s32 %s24, %s36
      %p66 = scmp.eq.s32.totalorder %s65, 0
      %s68 = sadd.s32 %s67, 1
      %s69 = scalar_select %p66, %s67, %s68
      %p72 = pneg %p66
      %p73 = scmp.eq.s32.totalorder %s17, 1
      %p74 = por %p72, %p73
      %p75 = scmp.ne.s32.totalorder %s67, %s70
      %p76 = scmp.eq.s32.totalorder %s17, 0
      %p77 = por %p75, %p76
      %p78 = scmp.ne.s32.totalorder %s67, %s70
      %p79 = scmp.eq.s32.totalorder %s22, 1
      %p80 = por %p78, %p79
      %p81 = scmp.ne.s32.totalorder %s70, %s71
      %p82 = scmp.eq.s32.totalorder %s22, 0
      %p83 = por %p81, %p82
      %p84 = scmp.ne.s32.totalorder %s70, %s71
      %p85 = scmp.eq.s32.totalorder %s23, 1
      %p86 = por %p84, %p85
      %p88 = scmp.ne.s32.totalorder %s71, %s87
      %p89 = scmp.eq.s32.totalorder %s23, 0
      %p90 = por %p88, %p89
      %s92 = sadd.s32 %s91, 1
      %p95 = scmp.eq.s32.totalorder %s17, 1
      %p96 = scmp.ne.s32.totalorder %s91, %s93
      %p97 = scmp.eq.s32.totalorder %s17, 0
      %p98 = por %p96, %p97
      %p99 = scmp.ne.s32.totalorder %s91, %s93
      %p100 = scmp.eq.s32.totalorder %s22, 1
      %p101 = por %p99, %p100
      %p102 = scmp.ne.s32.totalorder %s93, %s94
      %p103 = scmp.eq.s32.totalorder %s22, 0
      %p104 = por %p102, %p103
      %p105 = scmp.ne.s32.totalorder %s93, %s94
      %p106 = scmp.eq.s32.totalorder %s23, 1
      %p107 = por %p105, %p106
      %p109 = scmp.ne.s32.totalorder %s94, %s108
      %p110 = scmp.eq.s32.totalorder %s23, 0
      %p111 = por %p109, %p110
      %s113 = sadd.s32 %s112, 1
      %p116 = scmp.eq.s32.totalorder %s17, 1
      %p117 = scmp.ne.s32.totalorder %s112, %s114
      %p118 = scmp.eq.s32.totalorder %s17, 0
      %p119 = por %p117, %p118
      %p120 = scmp.ne.s32.totalorder %s112, %s114
      %p121 = scmp.eq.s32.totalorder %s22, 1
      %p122 = por %p120, %p121
      %p123 = scmp.ne.s32.totalorder %s114, %s115
      %p124 = scmp.eq.s32.totalorder %s22, 0
      %p125 = por %p123, %p124
      %p126 = scmp.ne.s32.totalorder %s114, %s115
      %p127 = scmp.eq.s32.totalorder %s23, 1
      %p128 = por %p126, %p127
      %p130 = scmp.ne.s32.totalorder %s115, %s129
      %p131 = scmp.eq.s32.totalorder %s23, 0
      %p132 = por %p130, %p131
      %s134 = sadd.s32 %s133, 1
      %p137 = scmp.eq.s32.totalorder %s17, 1
      %p138 = scmp.ne.s32.totalorder %s133, %s135
      %p139 = scmp.eq.s32.totalorder %s17, 0
      %p140 = por %p138, %p139
      %p141 = scmp.ne.s32.totalorder %s133, %s135
      %p142 = scmp.eq.s32.totalorder %s22, 1
      %p143 = por %p141, %p142
      %p144 = scmp.ne.s32.totalorder %s135, %s136
      %p145 = scmp.eq.s32.totalorder %s22, 0
      %p146 = por %p144, %p145
      %p147 = scmp.ne.s32.totalorder %s135, %s136
      %p148 = scmp.eq.s32.totalorder %s23, 1
      %p149 = por %p147, %p148
      %p151 = scmp.ne.s32.totalorder %s136, %s150
      %p152 = scmp.eq.s32.totalorder %s23, 0
      %p153 = por %p151, %p152
      %s155 = sadd.s32 %s154, 1
      %p158 = scmp.eq.s32.totalorder %s17, 1
      %p159 = scmp.ne.s32.totalorder %s154, %s156
      %p160 = scmp.eq.s32.totalorder %s17, 0
      %p161 = por %p159, %p160
      %p162 = scmp.ne.s32.totalorder %s154, %s156
      %p163 = scmp.eq.s32.totalorder %s22, 1
      %p164 = por %p162, %p163
      %p165 = scmp.ne.s32.totalorder %s156, %s157
      %p166 = scmp.eq.s32.totalorder %s22, 0
      %p167 = por %p165, %p166
      %p168 = scmp.ne.s32.totalorder %s156, %s157
      %p169 = scmp.eq.s32.totalorder %s23, 1
      %p170 = por %p168, %p169
      %p172 = scmp.ne.s32.totalorder %s157, %s171
      %p173 = scmp.eq.s32.totalorder %s23, 0
      %p174 = por %p172, %p173
      %s175 = ssub.s32 %s24, %s36
      %p176 = scmp.eq.s32.totalorder %s175, 0
      %s178 = sadd.s32 %s177, 1
      %s179 = scalar_select %p176, %s177, %s178
      %p182 = pneg %p176
      %p183 = scmp.eq.s32.totalorder %s17, 1
      %p184 = por %p182, %p183
      %p185 = scmp.ne.s32.totalorder %s177, %s180
      %p186 = scmp.eq.s32.totalorder %s17, 0
      %p187 = por %p185, %p186
      %p188 = scmp.ne.s32.totalorder %s177, %s180
      %p189 = scmp.eq.s32.totalorder %s22, 1
      %p190 = por %p188, %p189
      %p191 = scmp.ne.s32.totalorder %s180, %s181
      %p192 = scmp.eq.s32.totalorder %s22, 0
      %p193 = por %p191, %p192
      %p194 = scmp.ne.s32.totalorder %s180, %s181
      %p195 = scmp.eq.s32.totalorder %s23, 1
      %p196 = por %p194, %p195
      %p198 = scmp.ne.s32.totalorder %s181, %s197
      %p199 = scmp.eq.s32.totalorder %s23, 0
      %p200 = por %p198, %p199
      %p201 = scmp.le.s32.totalorder 1, %s17
      %p202 = scmp.lt.s32.totalorder %s17, 3
      %p203 = pnand %p201, %p202
      %p204 = pneg %p203
      // Predicated region
      $region9: #{tpu_custom_call.1} parent=5 // pred_check
        _
      $region10: #{tpu_custom_call.1} parent=5 // pred_check_branch
        %206 = sbr.rel (%p203) target = $region12
      $region11: #{tpu_custom_call.1} parent=5 // pred_region
        %s207 = ssub.s32 %s17, 1
        // Predicated region
        $region13: #{tpu_custom_call.1} parent=11 // pred_check
          %p208 = pneg %p83
        $region14: #{tpu_custom_call.1} parent=11 // pred_check_branch
          %210 = sbr.rel (%p208) target = $region16
        $region15: #{tpu_custom_call.1} parent=11 // pred_region
          %p211 = scmp.lt.s32.totalorder %s26, 0
          %s212 = scalar_select %p211, %s26, 0
          %s213 = smul.addr %s212, 2
          %s214 = scalar_lea.vmem %s1, %s213
        $region16: #{tpu_custom_call.1} parent=11 // pred_fallthru
          _
        // Predicated region
        $region17: #{tpu_custom_call.1} parent=11 // pred_check
          %p215 = pneg %p104
        $region18: #{tpu_custom_call.1} parent=11 // pred_check_branch
          %217 = sbr.rel (%p215) target = $region20
        $region19: #{tpu_custom_call.1} parent=11 // pred_region
          %s219 = ssub.s32 256, 256
          %220 = vsyncadd [#allocation7], %s219
          %s221 = sshll.u32 [#allocation6], 4
          %s222 = int_to_ptr.vmem [resolvable:$true] %s221
          %227 = dma.hbm_to_vmem [thread:$0]  %s2, 256, %s222, [#allocation7], 64, 64, 4
        $region20: #{tpu_custom_call.1} parent=11 // pred_fallthru
          _
        // Predicated region
        $region21: #{tpu_custom_call.1} parent=11 // pred_check
          %p228 = pneg %p125
        $region22: #{tpu_custom_call.1} parent=11 // pred_check_branch
          %230 = sbr.rel (%p228) target = $region24
        $region23: #{tpu_custom_call.1} parent=11 // pred_region
          _
        $region24: #{tpu_custom_call.1} parent=11 // pred_fallthru
          _
        // Predicated region
        $region25: #{tpu_custom_call.1} parent=11 // pred_check
          %p231 = pneg %p146
        $region26: #{tpu_custom_call.1} parent=11 // pred_check_branch
          %233 = sbr.rel (%p231) target = $region28
        $region27: #{tpu_custom_call.1} parent=11 // pred_region
          _
        $region28: #{tpu_custom_call.1} parent=11 // pred_fallthru
          _
        // Predicated region
        $region29: #{tpu_custom_call.1} parent=11 // pred_check
          %p234 = pneg %p167
        $region30: #{tpu_custom_call.1} parent=11 // pred_check_branch
          %236 = sbr.rel (%p234) target = $region32
        $region31: #{tpu_custom_call.1} parent=11 // pred_region
          _
        $region32: #{tpu_custom_call.1} parent=11 // pred_fallthru
          _
      $region12: #{tpu_custom_call.1} parent=5 // pred_fallthru
        _
      %p237 = scmp.lt.s32.totalorder %s17, 2
      // Predicated region
      $region33: #{tpu_custom_call.1} parent=5 // pred_check
        %p238 = pneg %p237
      $region34: #{tpu_custom_call.1} parent=5 // pred_check_branch
        %240 = sbr.rel (%p238) target = $region36
      $region35: #{tpu_custom_call.1} parent=5 // pred_region
        // Predicated region
        $region37: #{tpu_custom_call.1} parent=35 // pred_check
          %p241 = pneg %p51
        $region38: #{tpu_custom_call.1} parent=35 // pred_check_branch
          %243 = sbr.rel (%p241) target = $region40
        $region39: #{tpu_custom_call.1} parent=35 // pred_region
          %s244 = sand.u32 %s41, 1
          %s245 = scalar_lea.sflag [#allocation4], %s244
          %s246 = sand.u32 %s41, 1
          %s247 = smul.addr %s246, 16
          %s248 = scalar_lea.vmem [#allocation3], %s247
          %s249 = smul.u32 2, %s24
          %s251 = ssub.s32 256, 256
          %252 = vsyncadd %s245, %s251
          %s253 = smul.addr %s249, 2
          %s254 = sadd.s32 %s25, %s253
          %s255 = smul.addr %s254, 128
          %s256 = scalar_lea.hbm %s0, %s255
          %s257 = sshll.u32 %s248, 4
          %s258 = int_to_ptr.vmem [resolvable:$true] %s257
          %263 = dma.hbm_to_vmem [thread:$0]  %s256, 256, %s258, %s245, 256, 128, 8
        $region40: #{tpu_custom_call.1} parent=35 // pred_fallthru
          _
      $region36: #{tpu_custom_call.1} parent=5 // pred_fallthru
        _
      %p264 = scmp.le.s32.totalorder 1, %s17
      %p265 = scmp.lt.s32.totalorder %s17, 3
      %p266 = pnand %p264, %p265
      %p267 = pneg %p266
      // Predicated region
      $region41: #{tpu_custom_call.1} parent=5 // pred_check
        _
      $region42: #{tpu_custom_call.1} parent=5 // pred_check_branch
        %269 = sbr.rel (%p266) target = $region44
      $region43: #{tpu_custom_call.1} parent=5 // pred_region
        %s270 = ssub.s32 %s17, 1
        %s271 = sand.u32 %s44, 1
        %s272 = scalar_lea.sflag [#allocation4], %s271
        %s273 = sand.u32 %s44, 1
        %s274 = smul.addr %s273, 16
        %s275 = scalar_lea.vmem [#allocation3], %s274
        // Predicated region
        $region45: #{tpu_custom_call.1} parent=43 // pred_check
          %p276 = pneg %p57
        $region46: #{tpu_custom_call.1} parent=43 // pred_check_branch
          %278 = sbr.rel (%p276) target = $region48
        $region47: #{tpu_custom_call.1} parent=43 // pred_region
          %279 = dma.done %s272, 256
        $region48: #{tpu_custom_call.1} parent=43 // pred_fallthru
          _
        // Predicated region
        $region49: #{tpu_custom_call.1} parent=43 // pred_check
          %p280 = pneg %p104
        $region50: #{tpu_custom_call.1} parent=43 // pred_check_branch
          %282 = sbr.rel (%p280) target = $region52
        $region51: #{tpu_custom_call.1} parent=43 // pred_region
          %283 = dma.done [#allocation7], 256
        $region52: #{tpu_custom_call.1} parent=43 // pred_fallthru
          _
        %s284 = sand.u32 %s44, 1
        %s285 = scalar_lea.sflag [#allocation4], %s284
        %s286 = sand.u32 %s44, 1
        %s287 = smul.addr %s286, 16
        %s288 = scalar_lea.vmem [#allocation3], %s287
        %p289 = pneg %p57
        %p290 = pneg %p54
        %p291 = scmp.lt.s32.totalorder %s26, 0
        %s292 = scalar_select %p291, %s26, 0
        %s293 = smul.addr %s292, 2
        %s294 = scalar_lea.vmem %s1, %s293
        %p295 = pneg %p83
        %p296 = pneg %p80
        %p297 = pneg %p104
        %p298 = pneg %p101
        %p299 = pneg %p125
        %p300 = pneg %p122
        %p301 = pneg %p146
        %p302 = pneg %p143
        %p303 = pneg %p167
        %p304 = pneg %p164
        %p305 = pneg %p193
        %p306 = pneg %p190
        %s307 = smul.u32 2, %s26
        %p308 = scmp.lt.s32.totalorder %s26, 0
        %s309 = scalar_select %p308, %s26, 0
        %s310 = smul.addr %s309, 2
        %s311 = scalar_lea.vmem %s1, %s310
        %p313 = scmp.eq.s32.totalorder %s27, 0
        // Predicated region
        $region53: #{tpu_custom_call.1} parent=43 // pred_check
          %p314 = pneg %p313
        $region54: #{tpu_custom_call.1} parent=43 // pred_check_branch
          %316 = sbr.rel (%p314) target = $region56
        $region55: #{tpu_custom_call.1} parent=43 // pred_region
          %vm317 = vcmask 254976
          %318 = vst.msk [vmem:[#allocation2] sm:$0x3] %vm317, 0.0
        $region56: #{tpu_custom_call.1} parent=43 // pred_fallthru
          _
        %v319 = vld [vmem:[#allocation2] sm:$0x3]
        %v320 = vld [vmem:[%s275] sm:$0xff]
        %v321 = vld [vmem:[%s275 + $0x8] sm:$0xff]
        %vm322 = vcmask 261120
        %v323 = vsel %vm322, %v320, 0.0
        %v324 = vrot.slane %v323, 4
        %v325 = vadd.f32 %v323, %v324
        %v326 = vrot.slane %v325, 2
        %v327 = vadd.f32 %v325, %v326
        %v328 = vrot.slane %v327, 1
        %v329 = vadd.f32 %v327, %v328
        %v330 = vsel %vm322, %v321, 0.0
        %v331 = vrot.slane %v330, 4
        %v332 = vadd.f32 %v330, %v331
        %v333 = vrot.slane %v332, 2
        %v334 = vadd.f32 %v332, %v333
        %v335 = vrot.slane %v334, 1
        %v336 = vadd.f32 %v334, %v335
        %vm339 = vcmask 1041409
        %v340 = vsel %vm339, %v336, %v329
        %v342 = vadd.f32 %v319, %v340
        %vm343 = vcmask 254976
        %344 = vst.msk [vmem:[#allocation2] sm:$0x3] %vm343, %v342
        %p345 = scmp.eq.s32.totalorder %s27, 1
        // Predicated region
        $region57: #{tpu_custom_call.1} parent=43 // pred_check
          %p346 = pneg %p345
        $region58: #{tpu_custom_call.1} parent=43 // pred_check_branch
          %348 = sbr.rel (%p346) target = $region60
        $region59: #{tpu_custom_call.1} parent=43 // pred_region
          %v349 = vld [vmem:[#allocation2] sm:$0x3]
          %v350 = vld [vmem:[%s311] sm:$0x3]
          %352 = vset.pattern.permute.xlu0 0
          %353 = vperm.xlu0 %352, %v350
          %v354 = vpop.permute.xlu0 %353
          %v356 = vmul.f32 %v349, %v354
          %v357 = vpack.c.bf16 %v356, %v356
          %v358 = vld [vmem:[#allocation6] sm:$0xf]
          %v359 = vld [vmem:[#allocation6 + $0x4] sm:$0xf]
          %v360 = vld [vmem:[#allocation6 + $0x8] sm:$0xf]
          %v361 = vld [vmem:[#allocation6 + $0xc] sm:$0xf]
          %v362 = vld [vmem:[%s3] sm:$0x1]
          %v364 = vlaneseq
          %v365 = vshrl.u32 %v364, 7
          %v366 = vsub.s32 0, %v365
          %v367 = vrot.slane %v362, %v366
          %v373 = vunpack.c.l.b16 %v358
          %v374 = vunpack.c.l.b16 %v359
          %v375 = vunpack.c.l.b16 %v360
          %v376 = vunpack.c.l.b16 %v361
          %v377 = vpack.c.b16 %v374, %v373
          %v378 = vpack.c.b16 %v376, %v375
          %v382 = vsel %vm322, %v357, 0
          %384 = vmatprep.subr.bf16.mxu0 0
          %385 = vmatpush1.bf16.msra.mxu0 %v377
          %386 = vmatprep.subr.bf16.mxu0 0
          %387 = vmatpush1.bf16.msra.mxu0 %v378
          %388 = vmatprep.subr.bf16.mxu0 0
          %389 = vmatpush1.bf16.msra.mxu0 0
          %390 = vmatprep.subr.bf16.mxu0 0
          %391 = vmatpush1.bf16.msra.mxu0 0
          %392 = vmatprep.subr.bf16.mxu0 0
          %393 = vmatpush1.bf16.msra.mxu0 0
          %394 = vmatprep.subr.bf16.mxu0 0
          %395 = vmatpush1.bf16.msra.mxu0 0
          %396 = vmatprep.subr.bf16.mxu0 0
          %397 = vmatpush1.bf16.msra.mxu0 0
          %398 = vmatprep.subr.bf16.mxu0 0
          %399 = vmatpush1.bf16.msra.mxu0 0
          %400 = vmatprep.subr.bf16.mxu0 0
          %401 = vmatpush1.bf16.msra.mxu0 0
          %402 = vmatprep.subr.bf16.mxu0 0
          %403 = vmatpush1.bf16.msra.mxu0 0
          %404 = vmatprep.subr.bf16.mxu0 0
          %405 = vmatpush1.bf16.msra.mxu0 0
          %406 = vmatprep.subr.bf16.mxu0 0
          %407 = vmatpush1.bf16.msra.mxu0 0
          %408 = vmatprep.subr.bf16.mxu0 0
          %409 = vmatpush1.bf16.msra.mxu0 0
          %410 = vmatprep.subr.bf16.mxu0 0
          %411 = vmatpush1.bf16.msra.mxu0 0
          %412 = vmatprep.subr.bf16.mxu0 0
          %413 = vmatpush1.bf16.msra.mxu0 0
          %414 = vmatprep.subr.bf16.mxu0 0
          %415 = vmatpush1.bf16.msra.mxu0 0
          %416 = vmatprep.mubr.bf16.mxu0 0
          %417 = vmatmul.mubr.bf16.gmra.mrb[0].mxu0 %v382
          %v418 = vpop.f32.mrb[0].mxu0
          %v419 = vadd.f32 %v367, %v418
          %v420 = vpop.f32.mrb[0].mxu0
          %v421 = vpop.f32.mrb[0].mxu0
          %v422 = vpop.f32.mrb[0].mxu0
          %423 = vdwg.mxu0
          %v424 = vmax.f32 %v419, 0.0
          %v425 = vpack.c.bf16 %v424, %v424
          %v426 = vld [vmem:[%s4] sm:$0xf]
          %v427 = vld [vmem:[%s4 + $0x4] sm:$0xf]
          %v428 = vld [vmem:[%s4 + $0x8] sm:$0xf]
          %v429 = vld [vmem:[%s4 + $0xc] sm:$0xf]
          %v430 = vld [vmem:[%s5] sm:$0x1]
          %v432 = vlaneseq
          %v433 = vshrl.u32 %v432, 7
          %v434 = vsub.s32 0, %v433
          %v435 = vrot.slane %v430, %v434
          %v441 = vunpack.c.l.b16 %v426
          %v442 = vunpack.c.l.b16 %v427
          %v443 = vunpack.c.l.b16 %v428
          %v444 = vunpack.c.l.b16 %v429
          %v445 = vpack.c.b16 %v442, %v441
          %v446 = vpack.c.b16 %v444, %v443
          %v450 = vsel %vm322, %v425, 0
          %452 = vmatprep.subr.bf16.mxu0 0
          %453 = vmatpush1.bf16.msra.mxu0 %v445
          %454 = vmatprep.subr.bf16.mxu0 0
          %455 = vmatpush1.bf16.msra.mxu0 %v446
          %456 = vmatprep.subr.bf16.mxu0 0
          %457 = vmatpush1.bf16.msra.mxu0 0
          %458 = vmatprep.subr.bf16.mxu0 0
          %459 = vmatpush1.bf16.msra.mxu0 0
          %460 = vmatprep.subr.bf16.mxu0 0
          %461 = vmatpush1.bf16.msra.mxu0 0
          %462 = vmatprep.subr.bf16.mxu0 0
          %463 = vmatpush1.bf16.msra.mxu0 0
          %464 = vmatprep.subr.bf16.mxu0 0
          %465 = vmatpush1.bf16.msra.mxu0 0
          %466 = vmatprep.subr.bf16.mxu0 0
          %467 = vmatpush1.bf16.msra.mxu0 0
          %468 = vmatprep.subr.bf16.mxu0 0
          %469 = vmatpush1.bf16.msra.mxu0 0
          %470 = vmatprep.subr.bf16.mxu0 0
          %471 = vmatpush1.bf16.msra.mxu0 0
          %472 = vmatprep.subr.bf16.mxu0 0
          %473 = vmatpush1.bf16.msra.mxu0 0
          %474 = vmatprep.subr.bf16.mxu0 0
          %475 = vmatpush1.bf16.msra.mxu0 0
          %476 = vmatprep.subr.bf16.mxu0 0
          %477 = vmatpush1.bf16.msra.mxu0 0
          %478 = vmatprep.subr.bf16.mxu0 0
          %479 = vmatpush1.bf16.msra.mxu0 0
          %480 = vmatprep.subr.bf16.mxu0 0
          %481 = vmatpush1.bf16.msra.mxu0 0
          %482 = vmatprep.subr.bf16.mxu0 0
          %483 = vmatpush1.bf16.msra.mxu0 0
          %484 = vmatprep.mubr.bf16.mxu0 0
          %485 = vmatmul.mubr.bf16.gmra.mrb[0].mxu0 %v450
          %v486 = vpop.f32.mrb[0].mxu0
          %v487 = vadd.f32 %v435, %v486
          %v488 = vpop.f32.mrb[0].mxu0
          %v489 = vpop.f32.mrb[0].mxu0
          %v490 = vpop.f32.mrb[0].mxu0
          %491 = vdwg.mxu0
          %492 = vst [vmem:[#allocation8] sm:$0x3] %v487
        $region60: #{tpu_custom_call.1} parent=43 // pred_fallthru
          _
        // Predicated region
        $region61: #{tpu_custom_call.1} parent=43 // pred_check
          %p493 = pneg %p190
        $region62: #{tpu_custom_call.1} parent=43 // pred_check_branch
          %495 = sbr.rel (%p493) target = $region64
        $region63: #{tpu_custom_call.1} parent=43 // pred_region
          %s497 = ssub.s32 32, 32
          %498 = vsyncadd [#allocation5], %s497
          %s499 = smul.addr %s26, 32
          %s500 = scalar_lea.hbm %s6, %s499
          %s502 = sshll.u32 [#allocation8], 4
          %s503 = int_to_ptr.vmem [resolvable:$true] %s502
          %505 = dma.vmem_to_hbm [thread:$0]  %s503, 32, %s500, [#allocation5]
        $region64: #{tpu_custom_call.1} parent=43 // pred_fallthru
          _
        // Predicated region
        $region65: #{tpu_custom_call.1} parent=43 // pred_check
          %p506 = pneg %p190
        $region66: #{tpu_custom_call.1} parent=43 // pred_check_branch
          %508 = sbr.rel (%p506) target = $region68
        $region67: #{tpu_custom_call.1} parent=43 // pred_region
          %509 = dma.done [#allocation5], 32
        $region68: #{tpu_custom_call.1} parent=43 // pred_fallthru
          _
      $region44: #{tpu_custom_call.1} parent=5 // pred_fallthru
        _
      %p510 = scmp.le.s32.totalorder 2, %s17
      // Predicated region
      $region69: #{tpu_custom_call.1} parent=5 // pred_check
        %p511 = pneg %p510
      $region70: #{tpu_custom_call.1} parent=5 // pred_check_branch
        %513 = sbr.rel (%p511) target = $region72
      $region71: #{tpu_custom_call.1} parent=5 // pred_region
        %s514 = ssub.s32 %s17, 2
      $region72: #{tpu_custom_call.1} parent=5 // pred_fallthru
        _
    $region6: #{tpu_custom_call.1} parent=1 // loop_footer
      %s21 = sadd.s32 1, %s17
    $region7: #{tpu_custom_call.1} parent=1 // loop_footer_branch
      %16 = sbr.rel target = $region3
    $region8: #{tpu_custom_call.1} parent=1 // loop_exit
      _
    %515 = vsyncpa [#allocation4], 1
    %s516 = scalar_lea.sflag [#allocation4], 1
    %517 = vsyncpa %s516, 1
    %518 = vsyncpa [#allocation7], 1
    %519 = vsyncpa [#allocation5], 1
    %s520 = scalar_lea.sflag [#allocation5], 1
    %521 = vsyncpa %s520, 1

</llo_original>
